<compile_context>
chip_gen: v7x
topology: tpu7x:2x2x1
jax: 0.10.0
libtpu: 0.0.40
codegen_flags: <defaults>
</compile_context>

<pallas_src>
import functools

import jax
import jax.numpy as jnp
from jax.experimental import pallas as pl
from jax.experimental.pallas import tpu as pltpu


def _round_up(x, m):
    return ((x + m - 1) // m) * m


def _make_bow_kernel(valid_v, tk):
    """Kernel factory. valid_v / tk are static, so the tail mask compiles away
    entirely when tk divides V."""
    mask_tail = (valid_v % tk) != 0

    def kernel(x_ref, w_ref, b_ref, o_ref):
        # x_ref: (tm, tk) f32 (streamed as-is from HBM)
        # w_ref: (tk, L)  bf16 (persistent parameter layout)
        # b_ref: (1, L)   f32
        # o_ref: (tm, L)  f32 output block, VMEM-resident across the k axis.
        k = pl.program_id(1)

        @pl.when(k == 0)
        def _init():
            o_ref[...] = jnp.zeros_like(o_ref)

        x = x_ref[...]
        w = w_ref[...]
        if mask_tail:
            # Zero the out-of-range vocab tail of the (partial) last k block.
            # Both operands are masked so garbage bits in the partially-fetched
            # blocks can never reach the accumulator.
            base = k * tk
            col = jax.lax.broadcasted_iota(jnp.int32, x.shape, 1)
            x = jnp.where(base + col < valid_v, x, jnp.zeros_like(x))
            row = jax.lax.broadcasted_iota(jnp.int32, w.shape, 0)
            w = jnp.where(base + row < valid_v, w, jnp.zeros_like(w))

        # bf16 MXU operands, f32 accumulation directly into the output block.
        o_ref[...] += jnp.dot(x.astype(jnp.bfloat16), w,
                              preferred_element_type=jnp.float32)

        @pl.when(k == pl.num_programs(1) - 1)
        def _finalize():
            o_ref[...] = jax.nn.sigmoid(o_ref[...] + b_ref[...])  # f32 epilogue

    return kernel


def prepare_params(weight_torch_layout, bias):
    """One-time parameter setup (NOT in the jitted forward):
    torch (L, V) weight -> persistent bf16 (V, L); bias -> (1, L) f32."""
    weight_vl = jnp.asarray(weight_torch_layout, jnp.float32).T.astype(jnp.bfloat16)
    bias2d = jnp.asarray(bias, jnp.float32).reshape(1, -1)
    return weight_vl, bias2d


@functools.partial(jax.jit, static_argnames=("tm", "tk"))
def bow_classifier_forward(bow_vec, weight_vl, bias2d, *, tm=512, tk=4096):
    """bow_vec: (B, V) f32 (streamed as-is); weight_vl: (V, L) bf16; bias2d: (1, L) f32."""
    B, V = bow_vec.shape
    Vw, L = weight_vl.shape
    assert Vw == V and bias2d.shape == (1, L)

    # Batch tile: for tiny B use the full batch (block == array dim, always legal);
    # otherwise sublane-align to 16 and make sure the "parallel" axis has >= 2
    # tiles whenever B allows it (feeds both v7x TensorCores).
    if B <= 16:
        tm = B
    else:
        tm = min(tm, _round_up(B, 16))
        if pl.cdiv(B, tm) < 2:
            tm = _round_up(pl.cdiv(B, 2), 16)

    # Vocab (reduction) tile: lane-aligned; the V % tk tail is masked in-kernel.
    tk = min(tk, _round_up(V, 128))

    grid = (pl.cdiv(B, tm), pl.cdiv(V, tk))
    Bp = grid[0] * tm  # padded output rows (tiny; sliced off below)

    cost = pl.CostEstimate(
        flops=2 * B * V * L,
        transcendentals=B * L,
        bytes_accessed=(B * V * bow_vec.dtype.itemsize
                        + V * L * weight_vl.dtype.itemsize
                        + B * L * 4 + L * 4),
    )

    out_padded = pl.pallas_call(
        _make_bow_kernel(V, tk),
        out_shape=jax.ShapeDtypeStruct((Bp, L), jnp.float32),
        grid_spec=pltpu.PrefetchScalarGridSpec(
            num_scalar_prefetch=0,
            grid=grid,
            in_specs=[
                pl.BlockSpec((tm, tk), lambda i, k: (i, k)),   # x tile (f32 stream)
                pl.BlockSpec((tk, L), lambda i, k: (k, 0)),    # bf16 weight tile
                pl.BlockSpec((1, L), lambda i, k: (0, 0)),     # bias (resident)
            ],
            out_specs=pl.BlockSpec((tm, L), lambda i, k: (i, 0)),
        ),
        compiler_params=pltpu.CompilerParams(
            dimension_semantics=("parallel", "arbitrary"),
            vmem_limit_bytes=48 * 1024 * 1024,
        ),
        cost_estimate=cost,
    )(bow_vec, weight_vl, bias2d)

    return out_padded[:B]


if __name__ == "__main__":
    # Small demo shapes. vocab_size=160 with tk=128 exercises the multi-step
    # reduction, the k==0 / k==last accumulator pattern and the in-kernel vocab
    # tail mask.  At this scale the fixed pallas_call overhead dwarfs the work;
    # the kernel only pays off at large B*V.
    batch, vocab_size, num_labels = 6, 160, 4

    key = jax.random.PRNGKey(0)
    k_x, k_w, k_b = jax.random.split(key, 3)

    # Mimic nn.Linear init (uniform(-1/sqrt(V), 1/sqrt(V))) in torch (L, V)
    # layout, then convert ONCE at parameter setup to the persistent bf16 (V, L)
    # kernel layout — no per-forward transpose/cast traffic.
    bound = 1.0 / jnp.sqrt(jnp.float32(vocab_size))
    weight_torch = jax.random.uniform(k_w, (num_labels, vocab_size),
                                      jnp.float32, -bound, bound)
    bias = jax.random.uniform(k_b, (num_labels,), jnp.float32, -bound, bound)
    weight_vl, bias2d = prepare_params(weight_torch, bias)

    # Bag-of-words counts, streamed into the kernel as f32 (no wrapper copy).
    bow_vec = jax.random.randint(k_x, (batch, vocab_size), 0, 5).astype(jnp.float32)

    out = bow_classifier_forward(bow_vec, weight_vl, bias2d, tk=128)
    out = jax.block_until_ready(out)

    # Reference with the same bf16 MXU-operand precision (f32 accumulate) — tight check.
    x16 = bow_vec.astype(jnp.bfloat16).astype(jnp.float32)
    w16 = weight_vl.astype(jnp.float32)
    ref_bf16 = jax.nn.sigmoid(x16 @ w16 + bias)
    # Full-f32 reference — loose sanity check on the bf16-operand rounding.
    ref_f32 = jax.nn.sigmoid(bow_vec @ weight_torch.T + bias)

    assert out.shape == (batch, num_labels)
    assert jnp.allclose(out, ref_bf16, atol=1e-4), "mismatch vs bf16-operand reference"
    assert jnp.allclose(out, ref_f32, atol=5e-2), "mismatch vs f32 reference"

    print("KERNEL_OK")
</pallas_src>

<mosaic_0001>
module attributes {stable_mosaic.version = 11 : i64} {
  func.func @kernel(%arg0: i32, %arg1: i32, %arg2: memref<6x128xf32, #tpu.memory_space<vmem>>, %arg3: memref<128x4xbf16, #tpu.memory_space<vmem>>, %arg4: memref<1x4xf32, #tpu.memory_space<vmem>>, %arg5: memref<6x4xf32, #tpu.memory_space<vmem>>) attributes {dimension_semantics = [#tpu.dimension_semantics<parallel>, #tpu.dimension_semantics<arbitrary>], iteration_bounds = array<i64: 1, 2>, scalar_prefetch = 0 : i64, scratch_operands = 0 : i64, tpu.core_type = #tpu.core_type<tc>, window_params = [{transform_indices = @transform_0, window_bounds = array<i64: 6, 128>}, {transform_indices = @transform_1, window_bounds = array<i64: 128, 4>}, {pipeline_mode = #tpu.pipeline_mode<synchronous>, transform_indices = @transform_2, window_bounds = array<i64: 1, 4>}, {transform_indices = @transform_3, window_bounds = array<i64: 6, 4>}]} {
    %c0_i32 = arith.constant 0 : i32
    %0 = arith.cmpi eq, %arg1, %c0_i32 : i32
    %1 = arith.extui %0 : i1 to i32
    %c0_i32_0 = arith.constant 0 : i32
    %2 = arith.cmpi ne, %1, %c0_i32_0 : i32
    scf.if %2 {
      %cst_12 = arith.constant 0.000000e+00 : f32
      %28 = vector.broadcast %cst_12 : f32 to vector<6x4xf32>
      %c0_13 = arith.constant 0 : index
      %c0_14 = arith.constant 0 : index
      %29 = vector.load %arg5[%c0_13, %c0_14] : memref<6x4xf32, #tpu.memory_space<vmem>>, vector<6x4xf32>
      tpu.vector_store %arg5[%c0_13, %c0_14], %28 {strides = array<i32>} : memref<6x4xf32, #tpu.memory_space<vmem>>, vector<6x4xf32>,
    } else {
    }
    %c0 = arith.constant 0 : index
    %c0_1 = arith.constant 0 : index
    %3 = vector.load %arg2[%c0, %c0_1] : memref<6x128xf32, #tpu.memory_space<vmem>>, vector<6x128xf32>
    %c0_2 = arith.constant 0 : index
    %c0_3 = arith.constant 0 : index
    %4 = vector.load %arg3[%c0_2, %c0_3] : memref<128x4xbf16, #tpu.memory_space<vmem>>, vector<128x4xbf16>
    %c128_i32 = arith.constant 128 : i32
    %5 = arith.muli %arg1, %c128_i32 : i32
    %6 = tpu.iota {dimensions = array<i32: 1>} : vector<6x128xi32>
    %7 = vector.broadcast %5 : i32 to vector<6x128xi32>
    %8 = arith.addi %7, %6 : vector<6x128xi32>
    %c160_i32 = arith.constant 160 : i32
    %9 = vector.broadcast %c160_i32 : i32 to vector<6x128xi32>
    %10 = arith.cmpi slt, %8, %9 : vector<6x128xi32>
    %cst = arith.constant 0.000000e+00 : f32
    %11 = vector.broadcast %cst : f32 to vector<6x128xf32>
    %12 = arith.select %10, %3, %11 : vector<6x128xi1>, vector<6x128xf32>
    %13 = tpu.iota {dimensions = array<i32: 0>} : vector<128x4xi32>
    %14 = vector.broadcast %5 : i32 to vector<128x4xi32>
    %15 = arith.addi %14, %13 : vector<128x4xi32>
    %c160_i32_4 = arith.constant 160 : i32
    %16 = vector.broadcast %c160_i32_4 : i32 to vector<128x4xi32>
    %17 = arith.cmpi slt, %15, %16 : vector<128x4xi32>
    %cst_5 = arith.constant 0.000000e+00 : bf16
    %18 = vector.broadcast %cst_5 : bf16 to vector<128x4xbf16>
    %19 = arith.select %17, %4, %18 : vector<128x4xi1>, vector<128x4xbf16>
    %c0_6 = arith.constant 0 : index
    %c0_7 = arith.constant 0 : index
    %20 = vector.load %arg5[%c0_6, %c0_7] : memref<6x4xf32, #tpu.memory_space<vmem>>, vector<6x4xf32>
    %21 = arith.truncf %12 : vector<6x128xf32> to vector<6x128xbf16>
    %cst_8 = arith.constant dense<0.000000e+00> : vector<6x4xf32>
    %22 = tpu.matmul %21, %19, %cst_8 {dimension_numbers = #tpu.dot_dimension_numbers<[1], [0], [0], [1], [0, 0, 1, 1], [], []>} : vector<6x128xbf16>, vector<128x4xbf16>, vector<6x4xf32> -> vector<6x4xf32>
    %23 = arith.addf %20, %22 : vector<6x4xf32>
    %c0_9 = arith.constant 0 : index
    %c0_10 = arith.constant 0 : index
    %24 = vector.load %arg5[%c0_9, %c0_10] : memref<6x4xf32, #tpu.memory_space<vmem>>, vector<6x4xf32>
    tpu.vector_store %arg5[%c0_9, %c0_10], %23 {strides = array<i32>} : memref<6x4xf32, #tpu.memory_space<vmem>>, vector<6x4xf32>,
    %c1_i32 = arith.constant 1 : i32
    %25 = arith.cmpi eq, %arg1, %c1_i32 : i32
    %26 = arith.extui %25 : i1 to i32
    %c0_i32_11 = arith.constant 0 : i32
    %27 = arith.cmpi ne, %26, %c0_i32_11 : i32
    scf.if %27 {
      %c0_12 = arith.constant 0 : index
      %c0_13 = arith.constant 0 : index
      %28 = vector.load %arg5[%c0_12, %c0_13] : memref<6x4xf32, #tpu.memory_space<vmem>>, vector<6x4xf32>
      %c0_14 = arith.constant 0 : index
      %c0_15 = arith.constant 0 : index
      %29 = vector.load %arg4[%c0_14, %c0_15] : memref<1x4xf32, #tpu.memory_space<vmem>>, vector<1x4xf32>
      %30 = vector.broadcast %29 : vector<1x4xf32> to vector<6x4xf32>
      %31 = arith.addf %28, %30 : vector<6x4xf32>
      %32 = arith.negf %31 : vector<6x4xf32>
      %33 = math.exp %32 : vector<6x4xf32>
      %cst_16 = arith.constant 1.000000e+00 : f32
      %34 = vector.broadcast %cst_16 : f32 to vector<6x4xf32>
      %35 = arith.addf %34, %33 : vector<6x4xf32>
      %36 = arith.divf %34, %35 : vector<6x4xf32>
      %c0_17 = arith.constant 0 : index
      %c0_18 = arith.constant 0 : index
      %37 = vector.load %arg5[%c0_17, %c0_18] : memref<6x4xf32, #tpu.memory_space<vmem>>, vector<6x4xf32>
      tpu.vector_store %arg5[%c0_17, %c0_18], %36 {strides = array<i32>} : memref<6x4xf32, #tpu.memory_space<vmem>>, vector<6x4xf32>,
    } else {
    }
    return
  }
  func.func @transform_0(%arg0: i32, %arg1: i32) -> (i32, i32) {
    %c0_i32 = arith.constant 0 : i32
    return %arg0, %arg1 : i32, i32
  }
  func.func @transform_1(%arg0: i32, %arg1: i32) -> (i32, i32) {
    %c0_i32 = arith.constant 0 : i32
    %c0_i32_0 = arith.constant 0 : i32
    return %arg1, %c0_i32 : i32, i32
  }
  func.func @transform_2(%arg0: i32, %arg1: i32) -> (i32, i32) {
    %c0_i32 = arith.constant 0 : i32
    %c0_i32_0 = arith.constant 0 : i32
    %c0_i32_1 = arith.constant 0 : i32
    return %c0_i32, %c0_i32_0 : i32, i32
  }
  func.func @transform_3(%arg0: i32, %arg1: i32) -> (i32, i32) {
    %c0_i32 = arith.constant 0 : i32
    %c0_i32_0 = arith.constant 0 : i32
    return %arg0, %c0_i32 : i32, i32
  }
}

</mosaic_0001>

<llo_original>
// kernel: bow_classifier_forward.1
$region0: #{bow_classifier_forward.1}
  #allocation0 [shape = 'u32[]', space=smem, size = 0x4, offset = 0x4, fixed_abs, tag = 'smem constant byte address 0x4 - core index']
  #allocation1 [shape = 'u32[144,128]{1,0:T(1,128)}', space=vmem, size = 0x12000, scoped, tag = 'internal scratch']
  %s0 = inlined_call_operand.vmem [shape: f32[6,160], index: 0, kind: input, shape index: {}]
  %s1 = inlined_call_operand.vmem [shape: bf16[160,4], index: 1, kind: input, shape index: {}]
  %s2 = inlined_call_operand.vmem [shape: f32[1,4], index: 2, kind: input, shape index: {}]
  %s3 = inlined_call_operand.vmem [shape: f32[6,4], index: 3, kind: output, shape index: {}]
  %s4 = sld [smem:[#allocation0]]
  $region53: #{bow_classifier_forward.1} parent=0
    _
  %s6 = ssub.s32 1, %s4
  %s7 = scalar_select 0, %s6, %s4
  loop: start=0, step=1, limit=4
  $region2: #{bow_classifier_forward.1} parent=0 // loop_pre_header
    _
  $region3: #{bow_classifier_forward.1} parent=0 // loop_header
    %s9 = sphi 0, %s13
    %p10 = scmp.ge.s32.totalorder %s9, 4
    %s16 = sphi 0, %s28
    %s17 = sphi 0, %s24
    %s18 = sphi 0, %s16
    %s19 = sphi 0, %s17
    %s20 = sphi 0, %s18
    %s21 = sphi 0, %s19
    %s33 = sphi 0, %s35
    %s36 = sphi 0, %s33
    %s37 = sphi 0, %s36
    %s53 = sphi 0, %s37
    %s59 = sphi 0, %s61
    %s62 = sphi 0, %s59
    %s63 = sphi 0, %s62
    %s79 = sphi 0, %s63
    %s83 = sphi 0, %s83
    %s85 = sphi 0, %s83
    %s86 = sphi 0, %s85
    %s100 = sphi 0, %s86
    %s106 = sphi 0, %s108
    %s109 = sphi 0, %s106
    %s110 = sphi 0, %s109
    %s126 = sphi 0, %s110
  $region4: #{bow_classifier_forward.1} parent=0 // loop_header_branch
    %12 = sbr.rel (%p10) target = $region8
  $region5: #{bow_classifier_forward.1} parent=0 // loop_body
    %s14 = ssub.s32 %s9, 1
    %s15 = ssub.s32 %s9, 2
    %s22 = sadd.s32 1, %s17
    %p23 = scmp.ge.s32.totalorder %s22, 2
    %s24 = scalar_select %p23, 0, %s22
    %s25 = sadd.s32 1, %s16
    %s26 = scalar_select %p23, %s25, %s16
    %p27 = scmp.ge.s32.totalorder %s26, 1
    %s28 = scalar_select %p27, 0, %s26
    %s29 = ssub.s32 %s16, %s28
    %s30 = ssub.s32 %s17, %s24
    %s31 = sor.u32 %s29, %s30
    %p32 = scmp.eq.s32.totalorder %s31, 0
    %s34 = sadd.s32 %s33, 1
    %s35 = scalar_select %p32, %s33, %s34
    %p38 = pneg %p32
    %p39 = scmp.eq.s32.totalorder %s9, 1
    %p40 = por %p38, %p39
    %p41 = scmp.ne.s32.totalorder %s33, %s36
    %p42 = scmp.eq.s32.totalorder %s9, 0
    %p43 = por %p41, %p42
    %p44 = scmp.ne.s32.totalorder %s33, %s36
    %p45 = scmp.eq.s32.totalorder %s14, 1
    %p46 = por %p44, %p45
    %p47 = scmp.ne.s32.totalorder %s36, %s37
    %p48 = scmp.eq.s32.totalorder %s14, 0
    %p49 = por %p47, %p48
    %p50 = scmp.ne.s32.totalorder %s36, %s37
    %p51 = scmp.eq.s32.totalorder %s15, 1
    %p52 = por %p50, %p51
    %p54 = scmp.ne.s32.totalorder %s37, %s53
    %p55 = scmp.eq.s32.totalorder %s15, 0
    %p56 = por %p54, %p55
    %s57 = ssub.s32 %s17, %s24
    %p58 = scmp.eq.s32.totalorder %s57, 0
    %s60 = sadd.s32 %s59, 1
    %s61 = scalar_select %p58, %s59, %s60
    %p64 = pneg %p58
    %p65 = scmp.eq.s32.totalorder %s9, 1
    %p66 = por %p64, %p65
    %p67 = scmp.ne.s32.totalorder %s59, %s62
    %p68 = scmp.eq.s32.totalorder %s9, 0
    %p69 = por %p67, %p68
    %p70 = scmp.ne.s32.totalorder %s59, %s62
    %p71 = scmp.eq.s32.totalorder %s14, 1
    %p72 = por %p70, %p71
    %p73 = scmp.ne.s32.totalorder %s62, %s63
    %p74 = scmp.eq.s32.totalorder %s14, 0
    %p75 = por %p73, %p74
    %p76 = scmp.ne.s32.totalorder %s62, %s63
    %p77 = scmp.eq.s32.totalorder %s15, 1
    %p78 = por %p76, %p77
    %p80 = scmp.ne.s32.totalorder %s63, %s79
    %p81 = scmp.eq.s32.totalorder %s15, 0
    %p82 = por %p80, %p81
    %s84 = sadd.s32 %s83, 1
    %p87 = scmp.eq.s32.totalorder %s9, 1
    %p88 = scmp.ne.s32.totalorder %s83, %s85
    %p89 = scmp.eq.s32.totalorder %s9, 0
    %p90 = por %p88, %p89
    %p91 = scmp.ne.s32.totalorder %s83, %s85
    %p92 = scmp.eq.s32.totalorder %s14, 1
    %p93 = por %p91, %p92
    %p94 = scmp.ne.s32.totalorder %s85, %s86
    %p95 = scmp.eq.s32.totalorder %s14, 0
    %p96 = por %p94, %p95
    %p97 = scmp.ne.s32.totalorder %s85, %s86
    %p98 = scmp.eq.s32.totalorder %s15, 1
    %p99 = por %p97, %p98
    %p101 = scmp.ne.s32.totalorder %s86, %s100
    %p102 = scmp.eq.s32.totalorder %s15, 0
    %p103 = por %p101, %p102
    %s104 = ssub.s32 %s16, %s28
    %p105 = scmp.eq.s32.totalorder %s104, 0
    %s107 = sadd.s32 %s106, 1
    %s108 = scalar_select %p105, %s106, %s107
    %p111 = pneg %p105
    %p112 = scmp.eq.s32.totalorder %s9, 1
    %p113 = por %p111, %p112
    %p114 = scmp.ne.s32.totalorder %s106, %s109
    %p115 = scmp.eq.s32.totalorder %s9, 0
    %p116 = por %p114, %p115
    %p117 = scmp.ne.s32.totalorder %s106, %s109
    %p118 = scmp.eq.s32.totalorder %s14, 1
    %p119 = por %p117, %p118
    %p120 = scmp.ne.s32.totalorder %s109, %s110
    %p121 = scmp.eq.s32.totalorder %s14, 0
    %p122 = por %p120, %p121
    %p123 = scmp.ne.s32.totalorder %s109, %s110
    %p124 = scmp.eq.s32.totalorder %s15, 1
    %p125 = por %p123, %p124
    %p127 = scmp.ne.s32.totalorder %s110, %s126
    %p128 = scmp.eq.s32.totalorder %s15, 0
    %p129 = por %p127, %p128
    %p130 = scmp.le.s32.totalorder 1, %s9
    %p131 = scmp.lt.s32.totalorder %s9, 3
    %p132 = pnand %p130, %p131
    %p133 = pneg %p132
    // Predicated region
    $region9: #{bow_classifier_forward.1} parent=5 // pred_check
      _
    $region10: #{bow_classifier_forward.1} parent=5 // pred_check_branch
      %135 = sbr.rel (%p132) target = $region12
    $region11: #{bow_classifier_forward.1} parent=5 // pred_region
      %s136 = ssub.s32 %s9, 1
      // Predicated region
      $region13: #{bow_classifier_forward.1} parent=11 // pred_check
        %p137 = pneg %p96
      $region14: #{bow_classifier_forward.1} parent=11 // pred_check_branch
        %139 = sbr.rel (%p137) target = $region16
      $region15: #{bow_classifier_forward.1} parent=11 // pred_region
        _
      $region16: #{bow_classifier_forward.1} parent=11 // pred_fallthru
        _
    $region12: #{bow_classifier_forward.1} parent=5 // pred_fallthru
      _
    %p140 = scmp.lt.s32.totalorder %s9, 2
    // Predicated region
    $region17: #{bow_classifier_forward.1} parent=5 // pred_check
      %p141 = pneg %p140
    $region18: #{bow_classifier_forward.1} parent=5 // pred_check_branch
      %143 = sbr.rel (%p141) target = $region20
    $region19: #{bow_classifier_forward.1} parent=5 // pred_region
      // Predicated region
      $region21: #{bow_classifier_forward.1} parent=19 // pred_check
        %p144 = pneg %p43
      $region22: #{bow_classifier_forward.1} parent=19 // pred_check_branch
        %146 = sbr.rel (%p144) target = $region24
      $region23: #{bow_classifier_forward.1} parent=19 // pred_region
        %p147 = scmp.lt.s32.totalorder %s16, 0
        %s148 = scalar_select %p147, %s16, 0
        %p149 = scmp.lt.s32.totalorder %s17, 1
        %s150 = scalar_select %p149, %s17, 1
        %s151 = smul.addr %s148, 2
        %s152 = sadd.s32 %s150, %s151
        %s153 = smul.addr %s152, 8
        %s154 = scalar_lea.vmem %s0, %s153
      $region24: #{bow_classifier_forward.1} parent=19 // pred_fallthru
        _
      // Predicated region
      $region25: #{bow_classifier_forward.1} parent=19 // pred_check
        %p155 = pneg %p69
      $region26: #{bow_classifier_forward.1} parent=19 // pred_check_branch
        %157 = sbr.rel (%p155) target = $region28
      $region27: #{bow_classifier_forward.1} parent=19 // pred_region
        %s158 = smul.u32 16, %s17
        %s159 = ssub.s32 20, %s158
        %p160 = scmp.lt.s32.totalorder %s159, 16
        %s161 = scalar_select %p160, %s159, 16
        %s162 = smul.u32 64, %s161
        %p163 = scmp.lt.s32.totalorder %s158, 19
        %s164 = scalar_select %p163, %s158, 19
        %s165 = smul.addr %s164, 4
        %s166 = scalar_lea.vmem %s1, %s165
        %s167 = smul.u32 16, %s17
        %s168 = ssub.s32 20, %s167
        %p169 = scmp.lt.s32.totalorder %s168, 16
        %s170 = scalar_select %p169, %s168, 16
        %s171 = smul.u32 64, %s170
      $region28: #{bow_classifier_forward.1} parent=19 // pred_fallthru
        _
    $region20: #{bow_classifier_forward.1} parent=5 // pred_fallthru
      _
    %p172 = scmp.le.s32.totalorder 1, %s9
    %p173 = scmp.lt.s32.totalorder %s9, 3
    %p174 = pnand %p172, %p173
    %p175 = pneg %p174
    // Predicated region
    $region29: #{bow_classifier_forward.1} parent=5 // pred_check
      _
    $region30: #{bow_classifier_forward.1} parent=5 // pred_check_branch
      %177 = sbr.rel (%p174) target = $region32
    $region31: #{bow_classifier_forward.1} parent=5 // pred_region
      %s178 = ssub.s32 %s9, 1
      %p179 = scmp.lt.s32.totalorder %s18, 0
      %s180 = scalar_select %p179, %s18, 0
      %p181 = scmp.lt.s32.totalorder %s19, 1
      %s182 = scalar_select %p181, %s19, 1
      %s183 = smul.addr %s180, 2
      %s184 = sadd.s32 %s182, %s183
      %s185 = smul.addr %s184, 8
      %s186 = scalar_lea.vmem %s0, %s185
      %p187 = pneg %p49
      %p188 = pneg %p46
      %s189 = smul.u32 16, %s19
      %s190 = ssub.s32 20, %s189
      %p191 = scmp.lt.s32.totalorder %s190, 16
      %s192 = scalar_select %p191, %s190, 16
      %s193 = smul.u32 64, %s192
      %p194 = scmp.lt.s32.totalorder %s189, 19
      %s195 = scalar_select %p194, %s189, 19
      %s196 = smul.addr %s195, 4
      %s197 = scalar_lea.vmem %s1, %s196
      %p198 = pneg %p75
      %p199 = pneg %p72
      %p200 = pneg %p96
      %p201 = pneg %p93
      %p202 = pneg %p122
      %p203 = pneg %p119
      %p204 = scmp.lt.s32.totalorder %s18, 0
      %s205 = scalar_select %p204, %s18, 0
      %s206 = smul.addr %s205, 8
      %s207 = scalar_lea.vmem %s3, %s206
      %p208 = scmp.lt.s32.totalorder %s18, 0
      %s209 = scalar_select %p208, %s18, 0
      %p210 = scmp.lt.s32.totalorder %s19, 1
      %s211 = scalar_select %p210, %s19, 1
      %s212 = smul.addr %s209, 2
      %s213 = sadd.s32 %s211, %s212
      %s214 = smul.addr %s213, 8
      %s215 = scalar_lea.vmem %s0, %s214
      %s216 = smul.u32 16, %s19
      %s217 = ssub.s32 20, %s216
      %p218 = scmp.lt.s32.totalorder %s217, 16
      %s219 = scalar_select %p218, %s217, 16
      %s220 = smul.u32 64, %s219
      %p221 = scmp.lt.s32.totalorder %s216, 19
      %s222 = scalar_select %p221, %s216, 19
      %s223 = smul.addr %s222, 4
      %s224 = scalar_lea.vmem %s1, %s223
      %s225 = smul.u32 16, %s19
      %s226 = ssub.s32 20, %s225
      %p227 = scmp.lt.s32.totalorder %s226, 16
      %s228 = scalar_select %p227, %s226, 16
      %s229 = smul.u32 64, %s228
      %p230 = scmp.lt.s32.totalorder %s18, 0
      %s231 = scalar_select %p230, %s18, 0
      %s232 = smul.addr %s231, 8
      %s233 = scalar_lea.vmem %s3, %s232
      %p235 = scmp.eq.s32.totalorder %s19, 0
      // Predicated region
      $region33: #{bow_classifier_forward.1} parent=31 // pred_check
        %p236 = pneg %p235
      $region34: #{bow_classifier_forward.1} parent=31 // pred_check_branch
        %238 = sbr.rel (%p236) target = $region36
      $region35: #{bow_classifier_forward.1} parent=31 // pred_region
        %vm239 = vcmask 29696
        %240 = vst.msk [vmem:[%s233] sm:$0x3f] %vm239, 0.0
      $region36: #{bow_classifier_forward.1} parent=31 // pred_fallthru
        _
      %v241 = vld [vmem:[%s215] sm:$0x3f]
      %v242 = vld [vmem:[%s224] sm:$0xf]
      %v243 = vld [vmem:[%s224 + $0x4] sm:$0xf]
      %v244 = vld [vmem:[%s224 + $0x8] sm:$0xf]
      %v245 = vld [vmem:[%s224 + $0xc] sm:$0xf]
      %v246 = vld [vmem:[%s224 + $0x10] sm:$0xf]
      %v247 = vld [vmem:[%s224 + $0x14] sm:$0xf]
      %v248 = vld [vmem:[%s224 + $0x18] sm:$0xf]
      %v249 = vld [vmem:[%s224 + $0x1c] sm:$0xf]
      %v250 = vld [vmem:[%s224 + $0x20] sm:$0xf]
      %v251 = vld [vmem:[%s224 + $0x24] sm:$0xf]
      %v252 = vld [vmem:[%s224 + $0x28] sm:$0xf]
      %v253 = vld [vmem:[%s224 + $0x2c] sm:$0xf]
      %v254 = vld [vmem:[%s224 + $0x30] sm:$0xf]
      %v255 = vld [vmem:[%s224 + $0x34] sm:$0xf]
      %v256 = vld [vmem:[%s224 + $0x38] sm:$0xf]
      %v257 = vld [vmem:[%s224 + $0x3c] sm:$0xf]
      %s258 = smul.u32 %s19, 128
      %v259 = vlaneseq
      %v260 = vand.u32 %v259, 127
      %v261 = vstv %s258
      %v262 = vadd.s32 %v261, %v260
      %vm263 = vcmp.lt.s32.totalorder %v262, 160
      %v264 = vsel %vm263, %v241, 0.0
      %v265 = vlaneseq
      %v266 = vshrl.u32 %v265, 7
      %v267 = vadd.s32 %v266, 8
      %v268 = vadd.s32 %v266, 16
      %v269 = vadd.s32 %v266, 24
      %v270 = vadd.s32 %v266, 32
      %v271 = vadd.s32 %v266, 40
      %v272 = vadd.s32 %v266, 48
      %v273 = vadd.s32 %v266, 56
      %v274 = vadd.s32 %v266, 64
      %v275 = vadd.s32 %v266, 72
      %v276 = vadd.s32 %v266, 80
      %v277 = vadd.s32 %v266, 88
      %v278 = vadd.s32 %v266, 96
      %v279 = vadd.s32 %v266, 104
      %v280 = vadd.s32 %v266, 112
      %v281 = vadd.s32 %v266, 120
      %v282 = vadd.s32 %v261, %v266
      %v283 = vadd.s32 %v261, %v267
      %v284 = vadd.s32 %v261, %v268
      %v285 = vadd.s32 %v261, %v269
      %v286 = vadd.s32 %v261, %v270
      %v287 = vadd.s32 %v261, %v271
      %v288 = vadd.s32 %v261, %v272
      %v289 = vadd.s32 %v261, %v273
      %v290 = vadd.s32 %v261, %v274
      %v291 = vadd.s32 %v261, %v275
      %v292 = vadd.s32 %v261, %v276
      %v293 = vadd.s32 %v261, %v277
      %v294 = vadd.s32 %v261, %v278
      %v295 = vadd.s32 %v261, %v279
      %v296 = vadd.s32 %v261, %v280
      %v297 = vadd.s32 %v261, %v281
      %vm298 = vcmp.lt.s32.totalorder %v282, 160
      %vm299 = vcmp.lt.s32.totalorder %v283, 160
      %vm300 = vcmp.lt.s32.totalorder %v284, 160
      %vm301 = vcmp.lt.s32.totalorder %v285, 160
      %vm302 = vcmp.lt.s32.totalorder %v286, 160
      %vm303 = vcmp.lt.s32.totalorder %v287, 160
      %vm304 = vcmp.lt.s32.totalorder %v288, 160
      %vm305 = vcmp.lt.s32.totalorder %v289, 160
      %vm306 = vcmp.lt.s32.totalorder %v290, 160
      %vm307 = vcmp.lt.s32.totalorder %v291, 160
      %vm308 = vcmp.lt.s32.totalorder %v292, 160
      %vm309 = vcmp.lt.s32.totalorder %v293, 160
      %vm310 = vcmp.lt.s32.totalorder %v294, 160
      %vm311 = vcmp.lt.s32.totalorder %v295, 160
      %vm312 = vcmp.lt.s32.totalorder %v296, 160
      %vm313 = vcmp.lt.s32.totalorder %v297, 160
      %vm314 = vmpackc.low %vm298, %vm298
      %vm315 = vmpackc.low %vm299, %vm299
      %vm316 = vmpackc.low %vm300, %vm300
      %vm317 = vmpackc.low %vm301, %vm301
      %vm318 = vmpackc.low %vm302, %vm302
      %vm319 = vmpackc.low %vm303, %vm303
      %vm320 = vmpackc.low %vm304, %vm304
      %vm321 = vmpackc.low %vm305, %vm305
      %vm322 = vmpackc.low %vm306, %vm306
      %vm323 = vmpackc.low %vm307, %vm307
      %vm324 = vmpackc.low %vm308, %vm308
      %vm325 = vmpackc.low %vm309, %vm309
      %vm326 = vmpackc.low %vm310, %vm310
      %vm327 = vmpackc.low %vm311, %vm311
      %vm328 = vmpackc.low %vm312, %vm312
      %vm329 = vmpackc.low %vm313, %vm313
      %v330 = vsel %vm314, %v242, 0
      %v331 = vsel %vm315, %v243, 0
      %v332 = vsel %vm316, %v244, 0
      %v333 = vsel %vm317, %v245, 0
      %v334 = vsel %vm318, %v246, 0
      %v335 = vsel %vm319, %v247, 0
      %v336 = vsel %vm320, %v248, 0
      %v337 = vsel %vm321, %v249, 0
      %v338 = vsel %vm322, %v250, 0
      %v339 = vsel %vm323, %v251, 0
      %v340 = vsel %vm324, %v252, 0
      %v341 = vsel %vm325, %v253, 0
      %v342 = vsel %vm326, %v254, 0
      %v343 = vsel %vm327, %v255, 0
      %v344 = vsel %vm328, %v256, 0
      %v345 = vsel %vm329, %v257, 0
      %v346 = vld [vmem:[%s233] sm:$0x3f]
      %v347 = vpack.c.bf16 %v264, %v264
      %v364 = vunpack.c.l.b16 %v330
      %v365 = vunpack.c.l.b16 %v331
      %v366 = vunpack.c.l.b16 %v332
      %v367 = vunpack.c.l.b16 %v333
      %v368 = vunpack.c.l.b16 %v334
      %v369 = vunpack.c.l.b16 %v335
      %v370 = vunpack.c.l.b16 %v336
      %v371 = vunpack.c.l.b16 %v337
      %v372 = vunpack.c.l.b16 %v338
      %v373 = vunpack.c.l.b16 %v339
      %v374 = vunpack.c.l.b16 %v340
      %v375 = vunpack.c.l.b16 %v341
      %v376 = vunpack.c.l.b16 %v342
      %v377 = vunpack.c.l.b16 %v343
      %v378 = vunpack.c.l.b16 %v344
      %v379 = vunpack.c.l.b16 %v345
      %v380 = vpack.c.b16 %v365, %v364
      %v381 = vpack.c.b16 %v367, %v366
      %v382 = vpack.c.b16 %v369, %v368
      %v383 = vpack.c.b16 %v371, %v370
      %v384 = vpack.c.b16 %v373, %v372
      %v385 = vpack.c.b16 %v375, %v374
      %v386 = vpack.c.b16 %v377, %v376
      %v387 = vpack.c.b16 %v379, %v378
      %396 = vmatprep.subr.bf16.mxu0 0
      %397 = vmatpush1.bf16.msra.mxu0 %v380
      %398 = vmatprep.subr.bf16.mxu0 0
      %399 = vmatpush1.bf16.msra.mxu0 %v381
      %400 = vmatprep.subr.bf16.mxu0 0
      %401 = vmatpush1.bf16.msra.mxu0 %v382
      %402 = vmatprep.subr.bf16.mxu0 0
      %403 = vmatpush1.bf16.msra.mxu0 %v383
      %404 = vmatprep.subr.bf16.mxu0 0
      %405 = vmatpush1.bf16.msra.mxu0 %v384
      %406 = vmatprep.subr.bf16.mxu0 0
      %407 = vmatpush1.bf16.msra.mxu0 %v385
      %408 = vmatprep.subr.bf16.mxu0 0
      %409 = vmatpush1.bf16.msra.mxu0 %v386
      %410 = vmatprep.subr.bf16.mxu0 0
      %411 = vmatpush1.bf16.msra.mxu0 %v387
      %412 = vmatprep.subr.bf16.mxu0 0
      %413 = vmatpush1.bf16.msra.mxu0 0
      %414 = vmatprep.subr.bf16.mxu0 0
      %415 = vmatpush1.bf16.msra.mxu0 0
      %416 = vmatprep.subr.bf16.mxu0 0
      %417 = vmatpush1.bf16.msra.mxu0 0
      %418 = vmatprep.subr.bf16.mxu0 0
      %419 = vmatpush1.bf16.msra.mxu0 0
      %420 = vmatprep.subr.bf16.mxu0 0
      %421 = vmatpush1.bf16.msra.mxu0 0
      %422 = vmatprep.subr.bf16.mxu0 0
      %423 = vmatpush1.bf16.msra.mxu0 0
      %424 = vmatprep.subr.bf16.mxu0 0
      %425 = vmatpush1.bf16.msra.mxu0 0
      %426 = vmatprep.subr.bf16.mxu0 0
      %427 = vmatpush1.bf16.msra.mxu0 0
      %428 = vmatprep.mubr.bf16.mxu0 0
      %429 = vmatmul.mubr.bf16.gmra.mrb[0].mxu0 %v347
      %v430 = vpop.f32.mrb[0].mxu0
      %v431 = vadd.f32 0.0, %v430
      %v432 = vpop.f32.mrb[0].mxu0
      %v433 = vpop.f32.mrb[0].mxu0
      %v434 = vpop.f32.mrb[0].mxu0
      %435 = vdwg.mxu0
      %v436 = vadd.f32 %v346, %v431
      %vm437 = vcmask 29696
      %438 = vst.msk [vmem:[%s233] sm:$0x3f] %vm437, %v436
      %p439 = scmp.eq.s32.totalorder %s19, 1
      // Predicated region
      $region37: #{bow_classifier_forward.1} parent=31 // pred_check
        %p440 = pneg %p439
      $region38: #{bow_classifier_forward.1} parent=31 // pred_check_branch
        %442 = sbr.rel (%p440) target = $region40
      $region39: #{bow_classifier_forward.1} parent=31 // pred_region
        %v443 = vld [vmem:[%s233] sm:$0x3f]
        %v444 = vld [vmem:[%s2] sm:$0x1]
        %v446 = vlaneseq
        %v447 = vshrl.u32 %v446, 7
        %v448 = vsub.s32 0, %v447
        %v449 = vrot.slane %v444, %v448
        %v451 = vadd.f32 %v443, %v449
        %v452 = vxor.u32 %v451, 2147483648
        %v453 = vmul.f32 %v452, 1.442695
        %v454 = vpow.pop %v453
        %v455 = vadd.f32 %v454, 1.0
        %v456 = vrcp.pop %v455
        %v457 = vmul.f32 1.0, %v456
        %458 = vst.msk [vmem:[%s233] sm:$0x3f] %vm437, %v457
      $region40: #{bow_classifier_forward.1} parent=31 // pred_fallthru
        _
      %p459 = scmp.lt.s32.totalorder %s18, 0
      %s460 = scalar_select %p459, %s18, 0
      %s461 = smul.addr %s460, 8
      %s462 = scalar_lea.vmem %s3, %s461
      // Predicated region
      $region41: #{bow_classifier_forward.1} parent=31 // pred_check
        %p463 = pneg %p119
      $region42: #{bow_classifier_forward.1} parent=31 // pred_check_branch
        %465 = sbr.rel (%p463) target = $region44
      $region43: #{bow_classifier_forward.1} parent=31 // pred_region
        _
      $region44: #{bow_classifier_forward.1} parent=31 // pred_fallthru
        _
      // Predicated region
      $region45: #{bow_classifier_forward.1} parent=31 // pred_check
        %p466 = pneg %p119
      $region46: #{bow_classifier_forward.1} parent=31 // pred_check_branch
        %468 = sbr.rel (%p466) target = $region48
      $region47: #{bow_classifier_forward.1} parent=31 // pred_region
        %p469 = scmp.lt.s32.totalorder %s18, 0
        %s470 = scalar_select %p469, %s18, 0
        %s471 = smul.addr %s470, 8
        %s472 = scalar_lea.vmem %s3, %s471
      $region48: #{bow_classifier_forward.1} parent=31 // pred_fallthru
        _
    $region32: #{bow_classifier_forward.1} parent=5 // pred_fallthru
      _
    %p473 = scmp.le.s32.totalorder 2, %s9
    // Predicated region
    $region49: #{bow_classifier_forward.1} parent=5 // pred_check
      %p474 = pneg %p473
    $region50: #{bow_classifier_forward.1} parent=5 // pred_check_branch
      %476 = sbr.rel (%p474) target = $region52
    $region51: #{bow_classifier_forward.1} parent=5 // pred_region
      %s477 = ssub.s32 %s9, 2
    $region52: #{bow_classifier_forward.1} parent=5 // pred_fallthru
      _
  $region6: #{bow_classifier_forward.1} parent=0 // loop_footer
    %s13 = sadd.s32 1, %s9
  $region7: #{bow_classifier_forward.1} parent=0 // loop_footer_branch
    %8 = sbr.rel target = $region3
  $region8: #{bow_classifier_forward.1} parent=0 // loop_exit
    _

</llo_original>
